<compile_context>
chip_gen: v7x
topology: tpu7x:2x2x1
jax: 0.10.0
libtpu: 0.0.40
codegen_flags: <defaults>
</compile_context>

<pallas_src>
import jax
import jax.numpy as jnp
from jax.experimental import pallas as pl
from jax.experimental.pallas import tpu as pltpu

B = 2          # batch
F = 1000       # resnet18 feature width / fc1 input features

_SUBLANE = 8
_LANE = 128


def _round_up(n, m):
    return (n + m - 1) // m * m


def _head_kernel(x_ref, w_ref, b_ref, o_ref):
    """sigmoid(x @ W^T + b) for a Linear(F, 1) head.

    x_ref: (Bp, Fp) native dtype (e.g. bf16), VMEM
    w_ref: (1, Fp)  f32, VMEM   (fc1.weight, zero-padded on the lane axis)
    b_ref: (1, 1)   f32, SMEM   (fc1.bias — scalar read)
    o_ref: (Bp, 1)  f32, VMEM
    """
    x = x_ref[...].astype(jnp.float32)        # in-kernel upcast (v5e: no bf16 VPU)
    w = w_ref[...]                            # (1, Fp) broadcast over rows
    b = b_ref[0, 0]                           # SMEM scalar
    # Linear(F, 1) as elementwise mul (VPU) + lane reduction (XLU).
    # N=1 on the MXU would waste the systolic array at this size.
    logits = jnp.sum(x * w, axis=-1, keepdims=True) + b   # (Bp, 1) f32
    o_ref[...] = jax.nn.sigmoid(logits)


def net_head(features, fc1_weight, fc1_bias):
    """features: (B, F) any float dtype; fc1_weight: (1, F) ; fc1_bias: (1,).

    Returns (B,) f32 == torch.flatten(sigmoid(fc1(features)), 0).
    """
    b_, f_ = features.shape
    bp = _round_up(max(b_, 1), _SUBLANE)      # pad rows to a sublane multiple
    fp = _round_up(f_, _LANE)                 # pad lanes: 1000 -> 1024

    # Zero padding keeps the lane-sum exact (pad lanes contribute 0 * 0).
    x_p = jnp.pad(features, ((0, bp - b_), (0, fp - f_)))
    w_p = jnp.pad(fc1_weight.astype(jnp.float32), ((0, 0), (0, fp - f_)))
    b2d = fc1_bias.reshape(1, 1).astype(jnp.float32)

    out = pl.pallas_call(
        _head_kernel,
        out_shape=jax.ShapeDtypeStruct((bp, 1), jnp.float32),
        in_specs=[
            pl.BlockSpec(memory_space=pltpu.MemorySpace.VMEM),   # features
            pl.BlockSpec(memory_space=pltpu.MemorySpace.VMEM),   # weight
            pl.BlockSpec(memory_space=pltpu.MemorySpace.SMEM),   # bias scalar
        ],
        out_specs=pl.BlockSpec(memory_space=pltpu.MemorySpace.VMEM),
    )(x_p, w_p, b2d)

    # Drop padded rows; torch.flatten(x, 0) on (B, 1) -> (B,)
    return out[:b_, 0]


if __name__ == "__main__":
    key = jax.random.PRNGKey(0)
    k_feat, k_w, k_b = jax.random.split(key, 3)

    # Stand-in for resnet18(x): deterministic (B, 1000) feature/logit vector,
    # kept in bf16 (the backbone's native output dtype) — the kernel upcasts.
    features = jax.random.normal(k_feat, (B, F), dtype=jnp.float32).astype(jnp.bfloat16)

    # Deterministic fc1 parameters (nn.Linear(1000, 1) shapes).
    bound = 1.0 / jnp.sqrt(jnp.float32(F))
    fc1_weight = jax.random.uniform(k_w, (1, F), jnp.float32, -bound, bound)
    fc1_bias = jax.random.uniform(k_b, (1,), jnp.float32, -bound, bound)

    y = net_head(features, fc1_weight, fc1_bias)
    jax.block_until_ready(y)

    # Pure-JAX reference of the head, following the same numerics as the
    # kernel (bf16 features upcast to f32, f32 multiply + sum).
    feat_f32 = features.astype(jnp.float32)
    ref = jax.nn.sigmoid(
        jnp.sum(feat_f32 * fc1_weight, axis=-1) + fc1_bias[0]
    )

    assert y.shape == (B,)
    assert jnp.allclose(y, ref, atol=1e-5), (y, ref)

    print("KERNEL_OK")
</pallas_src>

<mosaic_0001>
module attributes {stable_mosaic.version = 11 : i64} {
  func.func @_head_kernel(%arg0: memref<8x1024xbf16, #tpu.memory_space<vmem>>, %arg1: memref<1x1024xf32, #tpu.memory_space<vmem>>, %arg2: memref<1x1xf32, #tpu.memory_space<smem>>, %arg3: memref<8x1xf32, #tpu.memory_space<vmem>>) attributes {dimension_semantics = [], scalar_prefetch = 0 : i64, scratch_operands = 0 : i64, tpu.core_type = #tpu.core_type<tc>} {
    %c0 = arith.constant 0 : index
    %c0_0 = arith.constant 0 : index
    %0 = vector.load %arg0[%c0, %c0_0] : memref<8x1024xbf16, #tpu.memory_space<vmem>>, vector<8x1024xbf16>
    %1 = arith.extf %0 : vector<8x1024xbf16> to vector<8x1024xf32>
    %c0_1 = arith.constant 0 : index
    %c0_2 = arith.constant 0 : index
    %2 = vector.load %arg1[%c0_1, %c0_2] : memref<1x1024xf32, #tpu.memory_space<vmem>>, vector<1x1024xf32>
    %c0_3 = arith.constant 0 : index
    %c0_4 = arith.constant 0 : index
    %3 = memref.load %arg2[%c0_3, %c0_4] : memref<1x1xf32, #tpu.memory_space<smem>>
    %4 = vector.broadcast %2 : vector<1x1024xf32> to vector<8x1024xf32>
    %5 = arith.mulf %1, %4 : vector<8x1024xf32>
    %cst = arith.constant dense<0.000000e+00> : vector<8xf32>
    %6 = vector.multi_reduction <add>, %5, %cst [1] : vector<8x1024xf32> to vector<8xf32>
    %7 = vector.shape_cast %6 : vector<8xf32> to vector<8x1xf32>
    %8 = vector.broadcast %3 : f32 to vector<8x1xf32>
    %9 = arith.addf %7, %8 : vector<8x1xf32>
    %10 = arith.negf %9 : vector<8x1xf32>
    %11 = math.exp %10 : vector<8x1xf32>
    %cst_5 = arith.constant 1.000000e+00 : f32
    %12 = vector.broadcast %cst_5 : f32 to vector<8x1xf32>
    %13 = arith.addf %12, %11 : vector<8x1xf32>
    %14 = arith.divf %12, %13 : vector<8x1xf32>
    %c0_6 = arith.constant 0 : index
    %c0_7 = arith.constant 0 : index
    %15 = vector.load %arg3[%c0_6, %c0_7] : memref<8x1xf32, #tpu.memory_space<vmem>>, vector<8x1xf32>
    tpu.vector_store %arg3[%c0_6, %c0_7], %14 {strides = array<i32>} : memref<8x1xf32, #tpu.memory_space<vmem>>, vector<8x1xf32>,
    return
  }
}

</mosaic_0001>

<llo_original>
// kernel: tpu_custom_call.1
$region0: #{tpu_custom_call.1}
  #allocation0 [shape = 'u32[]', space=smem, size = 0x4, offset = 0x4, fixed_abs, tag = 'smem constant byte address 0x4 - core index']
  #allocation1 [shape = 'u32[144,128]{1,0:T(1,128)}', space=vmem, size = 0x12000, scoped, tag = 'internal scratch']
  #allocation2 [shape = 'f32[1,1]{1,0:T(1,128)S(6)}', space=smem, size = 0x200, scoped, tag = 'scoped memory for tpu_custom_call.1']
  %s0 = inlined_call_operand.hbm [shape: bf16[8,1024], index: 0, kind: input, shape index: {}]
  %s1 = inlined_call_operand.hbm [shape: f32[1,1024], index: 1, kind: input, shape index: {}]
  %s2 = inlined_call_operand.<no memory space> [shape: f32[1,1], index: 2, kind: input, shape index: {}]
  %s3 = inlined_call_operand.vmem [shape: f32[8,1], index: 3, kind: output, shape index: {}]
  %s4 = sld [smem:[#allocation0]]
  $region30: #{tpu_custom_call.1} parent=0
    _
  %s6 = ssub.s32 1, %s4
  %s7 = scalar_select 0, %s6, %s4
  %8 = sst [smem:[#allocation2]] %s2
  $region1: #{tpu_custom_call.1} parent=0
    #allocation3 [shape = 'u8[16384]{0}', space=vmem, size = 0x4000, scoped, tag = 'input window, operand 0, single buffered']
    #allocation4 [shape = 's32[1]{0}', space=sflag, size = 0x4, scoped, tag = 'scoped memory for tpu_custom_call.1']
    #allocation5 [shape = 'u8[4096]{0}', space=vmem, size = 0x1000, scoped, tag = 'input window, operand 1, single buffered']
    #allocation6 [shape = 's32[1]{0}', space=sflag, size = 0x4, scoped, tag = 'scoped memory for tpu_custom_call.1']
    %9 = vsyncpa [#allocation4], 0
    %10 = vsyncpa [#allocation6], 0
    // Predicated region
    $region2: #{tpu_custom_call.1} parent=1 // pred_check
      _
    $region3: #{tpu_custom_call.1} parent=1 // pred_check_branch
      %12 = sbr.rel (0) target = $region5
    $region4: #{tpu_custom_call.1} parent=1 // pred_region
      %s14 = ssub.s32 512, 512
      %15 = vsyncadd [#allocation4], %s14
      %s17 = sshll.u32 [#allocation3], 4
      %s18 = int_to_ptr.vmem [resolvable:$true] %s17
      %20 = dma.hbm_to_vmem [thread:$0]  %s0, 512, %s18, [#allocation4]
    $region5: #{tpu_custom_call.1} parent=1 // pred_fallthru
      _
    // Predicated region
    $region6: #{tpu_custom_call.1} parent=1 // pred_check
      _
    $region7: #{tpu_custom_call.1} parent=1 // pred_check_branch
      %22 = sbr.rel (0) target = $region9
    $region8: #{tpu_custom_call.1} parent=1 // pred_region
      %s24 = ssub.s32 128, 128
      %25 = vsyncadd [#allocation6], %s24
      %s27 = sshll.u32 [#allocation5], 4
      %s28 = int_to_ptr.vmem [resolvable:$true] %s27
      %30 = dma.hbm_to_vmem [thread:$0]  %s1, 128, %s28, [#allocation6]
    $region9: #{tpu_custom_call.1} parent=1 // pred_fallthru
      _
    // Predicated region
    $region10: #{tpu_custom_call.1} parent=1 // pred_check
      _
    $region11: #{tpu_custom_call.1} parent=1 // pred_check_branch
      %32 = sbr.rel (0) target = $region13
    $region12: #{tpu_custom_call.1} parent=1 // pred_region
      _
    $region13: #{tpu_custom_call.1} parent=1 // pred_fallthru
      _
    // Predicated region
    $region14: #{tpu_custom_call.1} parent=1 // pred_check
      _
    $region15: #{tpu_custom_call.1} parent=1 // pred_check_branch
      %34 = sbr.rel (0) target = $region17
    $region16: #{tpu_custom_call.1} parent=1 // pred_region
      %35 = dma.done [#allocation4], 512
    $region17: #{tpu_custom_call.1} parent=1 // pred_fallthru
      _
    // Predicated region
    $region18: #{tpu_custom_call.1} parent=1 // pred_check
      _
    $region19: #{tpu_custom_call.1} parent=1 // pred_check_branch
      %37 = sbr.rel (0) target = $region21
    $region20: #{tpu_custom_call.1} parent=1 // pred_region
      %38 = dma.done [#allocation6], 128
    $region21: #{tpu_custom_call.1} parent=1 // pred_fallthru
      _
    %v39 = vld [vmem:[#allocation3] sm:$0xff]
    %v40 = vld [vmem:[#allocation3 + $0x8] sm:$0xff]
    %v41 = vld [vmem:[#allocation3 + $0x10] sm:$0xff]
    %v42 = vld [vmem:[#allocation3 + $0x18] sm:$0xff]
    %v43 = vunpack.c.l.bf16 %v39
    %v44 = vunpack.c.h.bf16 %v39
    %v45 = vunpack.c.l.bf16 %v40
    %v46 = vunpack.c.h.bf16 %v40
    %v47 = vunpack.c.l.bf16 %v41
    %v48 = vunpack.c.h.bf16 %v41
    %v49 = vunpack.c.l.bf16 %v42
    %v50 = vunpack.c.h.bf16 %v42
    %v51 = vld [vmem:[#allocation5] sm:$0xff]
    %s52 = sld [smem:[#allocation2]]
    %v54 = vlaneseq
    %v55 = vshrl.u32 %v54, 7
    %v56 = vsub.s32 0, %v55
    %v57 = vrot.slane %v51, %v56
    %v58 = vlaneseq
    %v59 = vshrl.u32 %v58, 7
    %v60 = vsub.s32 1, %v59
    %v61 = vrot.slane %v51, %v60
    %v62 = vlaneseq
    %v63 = vshrl.u32 %v62, 7
    %v64 = vsub.s32 2, %v63
    %v65 = vrot.slane %v51, %v64
    %v66 = vlaneseq
    %v67 = vshrl.u32 %v66, 7
    %v68 = vsub.s32 3, %v67
    %v69 = vrot.slane %v51, %v68
    %v70 = vlaneseq
    %v71 = vshrl.u32 %v70, 7
    %v72 = vsub.s32 4, %v71
    %v73 = vrot.slane %v51, %v72
    %v74 = vlaneseq
    %v75 = vshrl.u32 %v74, 7
    %v76 = vsub.s32 5, %v75
    %v77 = vrot.slane %v51, %v76
    %v78 = vlaneseq
    %v79 = vshrl.u32 %v78, 7
    %v80 = vsub.s32 6, %v79
    %v81 = vrot.slane %v51, %v80
    %v82 = vlaneseq
    %v83 = vshrl.u32 %v82, 7
    %v84 = vsub.s32 7, %v83
    %v85 = vrot.slane %v51, %v84
    %v94 = vmul.f32 %v43, %v57
    %v95 = vmul.f32 %v44, %v61
    %v96 = vmul.f32 %v45, %v65
    %v97 = vmul.f32 %v46, %v69
    %v98 = vmul.f32 %v47, %v73
    %v99 = vmul.f32 %v48, %v77
    %v100 = vmul.f32 %v49, %v81
    %v101 = vmul.f32 %v50, %v85
    %v102 = vadd.f32 %v94, %v95
    %v103 = vadd.f32 %v102, %v96
    %v104 = vadd.f32 %v103, %v97
    %v105 = vadd.f32 %v104, %v98
    %v106 = vadd.f32 %v105, %v99
    %v107 = vadd.f32 %v106, %v100
    %v108 = vadd.f32 %v107, %v101
    %109 = vadd.xlane.f32.xlu0 %v108
    %v110 = vpop.xlane.xlu0 %109
    %v111 = vstv %s52
    %v112 = vadd.f32 %v110, %v111
    %v113 = vxor.u32 %v112, 2147483648
    %v114 = vmul.f32 %v113, 1.442695
    %v115 = vpow.pop %v114
    %v116 = vadd.f32 %v115, 1.0
    %v117 = vrcp.pop %v116
    %v118 = vmul.f32 1.0, %v117
    %vm119 = vcmask 7168
    %120 = vst.msk [vmem:[%s3] sm:$0xff] %vm119, %v118
    // Predicated region
    $region22: #{tpu_custom_call.1} parent=1 // pred_check
      _
    $region23: #{tpu_custom_call.1} parent=1 // pred_check_branch
      %122 = sbr.rel (0) target = $region25
    $region24: #{tpu_custom_call.1} parent=1 // pred_region
      _
    $region25: #{tpu_custom_call.1} parent=1 // pred_fallthru
      _
    // Predicated region
    $region26: #{tpu_custom_call.1} parent=1 // pred_check
      _
    $region27: #{tpu_custom_call.1} parent=1 // pred_check_branch
      %124 = sbr.rel (0) target = $region29
    $region28: #{tpu_custom_call.1} parent=1 // pred_region
      _
    $region29: #{tpu_custom_call.1} parent=1 // pred_fallthru
      _
    %125 = vsyncpa [#allocation4], 1
    %126 = vsyncpa [#allocation6], 1

</llo_original>
